<compile_context>
chip_gen: v6e
topology: v6e:2x2x1
jax: 0.10.0
libtpu: 0.0.40
codegen_flags: <defaults>
</compile_context>

<pallas_src>
import jax
import jax.numpy as jnp
from jax.experimental import pallas as pl
from jax.experimental.pallas import tpu as pltpu


def _conv1x1_kernel(w_ref, b_ref, x_ref, o_ref):
    # w_ref: (Cout, Cin)   b_ref: (Cout, 1)
    # x_ref: (nb, Cin, tm) o_ref: (nb, Cout, tm)
    acc = jnp.einsum(
        "oc,ncm->nom", w_ref[...], x_ref[...],
        preferred_element_type=jnp.float32,
    )
    # (Cout, 1) bias broadcasts along batch-block and lanes with no x-lane work.
    o_ref[...] = (acc + b_ref[...]).astype(o_ref.dtype)


def _tile_params(N, Cin, Cout, M, dtype_bytes=4):
    """Byte-targeted, generation-aware tile sizing.

    Returns (nb, tm): batch-block and lane-tile sizes.
    """
    # Generation detection: v7x-class parts have 64 MiB VMEM per TC and
    # ~3.2 TB/s HBM (want >=4 MiB/step, tighter VMEM cap); v5e/v6e have
    # 128 MiB VMEM (want >=2 MiB/step, cap under v5e's 16 MiB scoped default).
    try:
        vmem_bytes = int(pltpu.get_tpu_info().vmem_capacity_bytes)
    except Exception:  # not on TPU / API unavailable: assume 128 MiB parts
        vmem_bytes = 128 << 20
    if vmem_bytes <= (64 << 20):
        target_step_bytes = 4 << 20
        vmem_budget = 24 << 20
    else:
        target_step_bytes = 2 << 20
        vmem_budget = 12 << 20

    per_lane_bytes = (Cin + Cout) * dtype_bytes  # bytes per (batch-row, lane)
    m_pad = pl.cdiv(M, 128) * 128

    # 1) Grow the lane tile toward the byte target (multiple of 128, <= padded M).
    tm = max(128, (target_step_bytes // per_lane_bytes) // 128 * 128)
    tm = min(tm, m_pad)

    # 2) If M alone cannot reach the target, block the batch axis.
    step_bytes = tm * per_lane_bytes
    nb = 1
    if step_bytes < target_step_bytes:
        nb = int(min(N, max(1, target_step_bytes // max(step_bytes, 1))))

    # 3) Respect the VMEM budget: 2x double-buffered (in + out) blocks + params.
    def working_set(nb_, tm_):
        return 2 * nb_ * tm_ * per_lane_bytes + Cout * (Cin + 1) * dtype_bytes

    while working_set(nb, tm) > vmem_budget and nb > 1:
        nb -= 1
    while working_set(nb, tm) > vmem_budget and tm > 128:
        tm = max(128, (tm // 2) // 128 * 128)

    return nb, tm


def conv1x1_pallas(x, weight, bias):
    """1x1 conv as a lane-dense batched matmul.

    x:      (N, Cin, M) f32  -- NCHW with spatial flattened (no transpose)
    weight: (Cout, Cin) f32  -- nn.Conv2d weight with the 1x1 kernel dims squeezed
    bias:   (Cout,)     f32
    returns (N, Cout, M) f32
    """
    N, Cin, M = x.shape
    Cout = weight.shape[0]

    nb, tm = _tile_params(N, Cin, Cout, M)
    grid = (pl.cdiv(N, nb), pl.cdiv(M, tm))  # tail blocks masked by Pallas

    bias2d = bias.reshape(Cout, 1)

    cost = pl.CostEstimate(
        flops=2 * N * Cout * Cin * M,
        bytes_accessed=4 * N * M * (Cin + Cout) + 4 * Cout * (Cin + 1),
        transcendentals=0,
    )

    return pl.pallas_call(
        _conv1x1_kernel,
        out_shape=jax.ShapeDtypeStruct((N, Cout, M), jnp.float32),
        grid_spec=pltpu.PrefetchScalarGridSpec(
            num_scalar_prefetch=0,
            grid=grid,
            in_specs=[
                pl.BlockSpec((Cout, Cin), lambda n, m: (0, 0)),  # weight resident
                pl.BlockSpec((Cout, 1), lambda n, m: (0, 0)),    # bias resident
                pl.BlockSpec((nb, Cin, tm), lambda n, m: (n, 0, m)),
            ],
            out_specs=pl.BlockSpec((nb, Cout, tm), lambda n, m: (n, 0, m)),
        ),
        compiler_params=pltpu.CompilerParams(
            dimension_semantics=("parallel", "parallel"),
        ),
        cost_estimate=cost,
    )(weight, bias2d, x)


class DirectionalCornerOutputLayerPallas:
    """JAX/Pallas equivalent of the PyTorch DirectionalCornerOutputLayer.

    forward(x) with x in NCHW applies a 1x1 Conv2d(in_channels, 5 + num_classes)
    and returns NCHW output of shape (N, 5 + num_classes, H, W).
    """

    def __init__(self, num_classes):
        self.num_classes = num_classes
        self.weight = None  # (Cout, Cin) -- nn.Conv2d weight with 1x1 dims squeezed
        self.bias = None    # (Cout,)

    def set_in_channels(self, in_channels, key):
        cout = 5 + self.num_classes
        kw, kb = jax.random.split(key)
        # Deterministic init mimicking nn.Conv2d's uniform(-1/sqrt(fan_in), +)
        bound = 1.0 / jnp.sqrt(jnp.float32(in_channels))
        self.weight = jax.random.uniform(
            kw, (cout, in_channels), jnp.float32, minval=-bound, maxval=bound
        )
        self.bias = jax.random.uniform(
            kb, (cout,), jnp.float32, minval=-bound, maxval=bound
        )

    def forward(self, x):
        if self.weight is None:
            raise ValueError("Input channels are not set. Call set_in_channels first.")
        N, Cin, H, W = x.shape
        Cout = self.weight.shape[0]
        # NCHW -> (N, Cin, H*W): pure reshape, no transpose / extra HBM pass.
        x3 = x.reshape(N, Cin, H * W)
        y3 = conv1x1_pallas(x3, self.weight, self.bias)
        # (N, Cout, H*W) -> NCHW
        return y3.reshape(N, Cout, H, W)


if __name__ == "__main__":
    key = jax.random.PRNGKey(0)
    k_x, k_params = jax.random.split(key)

    # Small shapes consistent with the module's forward.
    N, Cin, H, W = 2, 4, 16, 16
    num_classes = 3  # Cout = 5 + 3 = 8

    layer = DirectionalCornerOutputLayerPallas(num_classes)
    layer.set_in_channels(Cin, k_params)

    x = jax.random.normal(k_x, (N, Cin, H, W), jnp.float32)

    out = layer.forward(x)
    out = jax.block_until_ready(out)

    # Reference: plain-JAX 1x1 conv (einsum over channel dim) to sanity check.
    ref = jnp.einsum("nchw,oc->nohw", x, layer.weight) + layer.bias[None, :, None, None]
    assert out.shape == (N, 5 + num_classes, H, W), out.shape
    assert jnp.allclose(out, ref, atol=1e-5, rtol=1e-5), "mismatch vs reference"

    print("KERNEL_OK")
</pallas_src>

<mosaic_0001>
module attributes {stable_mosaic.version = 11 : i64} {
  func.func @_conv1x1_kernel(%arg0: i32, %arg1: i32, %arg2: memref<8x4xf32, #tpu.memory_space<vmem>>, %arg3: memref<8x1xf32, #tpu.memory_space<vmem>>, %arg4: memref<2x4x256xf32, #tpu.memory_space<vmem>>, %arg5: memref<2x8x256xf32, #tpu.memory_space<vmem>>) attributes {dimension_semantics = [#tpu.dimension_semantics<parallel>, #tpu.dimension_semantics<parallel>], iteration_bounds = array<i64: 1, 1>, scalar_prefetch = 0 : i64, scratch_operands = 0 : i64, tpu.core_type = #tpu.core_type<tc>, window_params = [{pipeline_mode = #tpu.pipeline_mode<synchronous>, transform_indices = @transform_0, window_bounds = array<i64: 8, 4>}, {pipeline_mode = #tpu.pipeline_mode<synchronous>, transform_indices = @transform_1, window_bounds = array<i64: 8, 1>}, {transform_indices = @transform_2, window_bounds = array<i64: 2, 4, 256>}, {transform_indices = @transform_3, window_bounds = array<i64: 2, 8, 256>}]} {
    %c0 = arith.constant 0 : index
    %c0_0 = arith.constant 0 : index
    %0 = vector.load %arg2[%c0, %c0_0] : memref<8x4xf32, #tpu.memory_space<vmem>>, vector<8x4xf32>
    %c0_1 = arith.constant 0 : index
    %c0_2 = arith.constant 0 : index
    %c0_3 = arith.constant 0 : index
    %1 = vector.load %arg4[%c0_1, %c0_2, %c0_3] : memref<2x4x256xf32, #tpu.memory_space<vmem>>, vector<2x4x256xf32>
    "tpu.trace_start"() <{level = 10 : i32, message = "oc,ncm->nom"}> : () -> ()
    %cst = arith.constant dense<0.000000e+00> : vector<2x256x8xf32>
    %2 = tpu.matmul %1, %0, %cst {dimension_numbers = #tpu.dot_dimension_numbers<[1], [1], [0, 2], [0], [0, 0, 0, 2, 1, 0], [], []>} : vector<2x4x256xf32>, vector<8x4xf32>, vector<2x256x8xf32> -> vector<2x256x8xf32>
    %3 = tpu.transpose %2, [0, 2, 1] : vector<2x256x8xf32> -> vector<2x8x256xf32>
    "tpu.trace_stop"() : () -> ()
    %c0_4 = arith.constant 0 : index
    %c0_5 = arith.constant 0 : index
    %4 = vector.load %arg3[%c0_4, %c0_5] : memref<8x1xf32, #tpu.memory_space<vmem>>, vector<8x1xf32>
    %5 = vector.shape_cast %4 : vector<8x1xf32> to vector<1x8x1xf32>
    %6 = vector.broadcast %5 : vector<1x8x1xf32> to vector<2x8x256xf32>
    %7 = arith.addf %3, %6 : vector<2x8x256xf32>
    %c0_6 = arith.constant 0 : index
    %c0_7 = arith.constant 0 : index
    %c0_8 = arith.constant 0 : index
    %8 = vector.load %arg5[%c0_6, %c0_7, %c0_8] : memref<2x8x256xf32, #tpu.memory_space<vmem>>, vector<2x8x256xf32>
    tpu.vector_store %arg5[%c0_6, %c0_7, %c0_8], %7 {strides = array<i32>} : memref<2x8x256xf32, #tpu.memory_space<vmem>>, vector<2x8x256xf32>,
    return
  }
  func.func @transform_0(%arg0: i32, %arg1: i32) -> (i32, i32) {
    %c0_i32 = arith.constant 0 : i32
    %c0_i32_0 = arith.constant 0 : i32
    %c0_i32_1 = arith.constant 0 : i32
    return %c0_i32, %c0_i32_0 : i32, i32
  }
  func.func @transform_1(%arg0: i32, %arg1: i32) -> (i32, i32) {
    %c0_i32 = arith.constant 0 : i32
    %c0_i32_0 = arith.constant 0 : i32
    %c0_i32_1 = arith.constant 0 : i32
    return %c0_i32, %c0_i32_0 : i32, i32
  }
  func.func @transform_2(%arg0: i32, %arg1: i32) -> (i32, i32, i32) {
    %c0_i32 = arith.constant 0 : i32
    %c0_i32_0 = arith.constant 0 : i32
    return %arg0, %c0_i32, %arg1 : i32, i32, i32
  }
  func.func @transform_3(%arg0: i32, %arg1: i32) -> (i32, i32, i32) {
    %c0_i32 = arith.constant 0 : i32
    %c0_i32_0 = arith.constant 0 : i32
    return %arg0, %c0_i32, %arg1 : i32, i32, i32
  }
}

</mosaic_0001>

<llo_original>
// kernel: tpu_custom_call.1
$region0: #{tpu_custom_call.1}
  #allocation0 [shape = 'u32[]', space=smem, size = 0x4, offset = 0x4, fixed_abs, tag = 'smem constant byte address 0x4 - core index']
  #allocation1 [shape = 'u32[144,128]{1,0:T(1,128)}', space=vmem, size = 0x12000, scoped, tag = 'internal scratch']
  %s0 = inlined_call_operand.vmem [shape: f32[8,4], index: 0, kind: input, shape index: {}]
  %s1 = inlined_call_operand.vmem [shape: f32[8,1], index: 1, kind: input, shape index: {}]
  %s2 = inlined_call_operand.vmem [shape: f32[2,4,256], index: 2, kind: input, shape index: {}]
  %s3 = inlined_call_operand.hbm [shape: f32[2,8,256], index: 3, kind: output, shape index: {}]
  %s4 = sld [smem:[#allocation0]]
  $region22: #{tpu_custom_call.1} parent=0
    _
  %s6 = ssub.s32 1, %s4
  %s7 = scalar_select 0, %s6, %s4
  $region1: #{tpu_custom_call.1} parent=0
    #allocation2 [shape = 'u8[16384]{0}', space=vmem, size = 0x4000, scoped, tag = 'output window, operand 0, single buffered']
    #allocation3 [shape = 's32[1]{0}', space=sflag, size = 0x4, scoped, tag = 'scoped memory for tpu_custom_call.1']
    %8 = vsyncpa [#allocation3], 0
    // Predicated region
    $region2: #{tpu_custom_call.1} parent=1 // pred_check
      _
    $region3: #{tpu_custom_call.1} parent=1 // pred_check_branch
      %10 = sbr.rel (0) target = $region5
    $region4: #{tpu_custom_call.1} parent=1 // pred_region
      _
    $region5: #{tpu_custom_call.1} parent=1 // pred_fallthru
      _
    // Predicated region
    $region6: #{tpu_custom_call.1} parent=1 // pred_check
      _
    $region7: #{tpu_custom_call.1} parent=1 // pred_check_branch
      %12 = sbr.rel (0) target = $region9
    $region8: #{tpu_custom_call.1} parent=1 // pred_region
      _
    $region9: #{tpu_custom_call.1} parent=1 // pred_fallthru
      _
    // Predicated region
    $region10: #{tpu_custom_call.1} parent=1 // pred_check
      _
    $region11: #{tpu_custom_call.1} parent=1 // pred_check_branch
      %14 = sbr.rel (0) target = $region13
    $region12: #{tpu_custom_call.1} parent=1 // pred_region
      _
    $region13: #{tpu_custom_call.1} parent=1 // pred_fallthru
      _
    %v15 = vld [vmem:[%s0] sm:$0xff]
    %v16 = vld [vmem:[%s2] sm:$0xff]
    %v17 = vld [vmem:[%s2 + $0x8] sm:$0xff]
    %v20 = vcombine.high %v16, %v16
    %v21 = vcombine.high %v17, %v17
    %24 = vxpose.xlu0.b32.start [1/16] %v16, 128
    %25 = vxpose.xlu0.b32.cont [2/16] 0.0, 128
    %26 = vxpose.xlu0.b32.cont [3/16] 0.0, 128
    %27 = vxpose.xlu0.b32.cont [4/16] 0.0, 128
    %28 = vxpose.xlu0.b32.cont [5/16] 0.0, 128
    %29 = vxpose.xlu0.b32.cont [6/16] 0.0, 128
    %30 = vxpose.xlu0.b32.cont [7/16] 0.0, 128
    %31 = vxpose.xlu0.b32.cont [8/16] 0.0, 128
    %32 = vxpose.xlu0.b32.cont [9/16] 0.0, 128
    %33 = vxpose.xlu0.b32.cont [10/16] 0.0, 128
    %34 = vxpose.xlu0.b32.cont [11/16] 0.0, 128
    %35 = vxpose.xlu0.b32.cont [12/16] 0.0, 128
    %36 = vxpose.xlu0.b32.cont [13/16] 0.0, 128
    %37 = vxpose.xlu0.b32.cont [14/16] 0.0, 128
    %38 = vxpose.xlu0.b32.cont [15/16] 0.0, 128
    %39 = vxpose.xlu0.b32.end [16/16] 0.0, 128
    %v40 = vpop.trf.xlu0
    %v41 = vpop.trf.xlu0
    %v42 = vpop.trf.xlu0
    %v43 = vpop.trf.xlu0
    %v44 = vpop.trf.xlu0
    %v45 = vpop.trf.xlu0
    %v46 = vpop.trf.xlu0
    %v47 = vpop.trf.xlu0
    %v48 = vpop.trf.xlu0
    %v49 = vpop.trf.xlu0
    %v50 = vpop.trf.xlu0
    %v51 = vpop.trf.xlu0
    %v52 = vpop.trf.xlu0
    %v53 = vpop.trf.xlu0
    %v54 = vpop.trf.xlu0
    %v55 = vpop.trf.xlu0
    %56 = vxpose.xlu0.b32.start [1/16] %v20, 128
    %57 = vxpose.xlu0.b32.cont [2/16] 0.0, 128
    %58 = vxpose.xlu0.b32.cont [3/16] 0.0, 128
    %59 = vxpose.xlu0.b32.cont [4/16] 0.0, 128
    %60 = vxpose.xlu0.b32.cont [5/16] 0.0, 128
    %61 = vxpose.xlu0.b32.cont [6/16] 0.0, 128
    %62 = vxpose.xlu0.b32.cont [7/16] 0.0, 128
    %63 = vxpose.xlu0.b32.cont [8/16] 0.0, 128
    %64 = vxpose.xlu0.b32.cont [9/16] 0.0, 128
    %65 = vxpose.xlu0.b32.cont [10/16] 0.0, 128
    %66 = vxpose.xlu0.b32.cont [11/16] 0.0, 128
    %67 = vxpose.xlu0.b32.cont [12/16] 0.0, 128
    %68 = vxpose.xlu0.b32.cont [13/16] 0.0, 128
    %69 = vxpose.xlu0.b32.cont [14/16] 0.0, 128
    %70 = vxpose.xlu0.b32.cont [15/16] 0.0, 128
    %71 = vxpose.xlu0.b32.end [16/16] 0.0, 128
    %v72 = vpop.trf.xlu0
    %v73 = vpop.trf.xlu0
    %v74 = vpop.trf.xlu0
    %v75 = vpop.trf.xlu0
    %v76 = vpop.trf.xlu0
    %v77 = vpop.trf.xlu0
    %v78 = vpop.trf.xlu0
    %v79 = vpop.trf.xlu0
    %v80 = vpop.trf.xlu0
    %v81 = vpop.trf.xlu0
    %v82 = vpop.trf.xlu0
    %v83 = vpop.trf.xlu0
    %v84 = vpop.trf.xlu0
    %v85 = vpop.trf.xlu0
    %v86 = vpop.trf.xlu0
    %v87 = vpop.trf.xlu0
    %88 = vxpose.xlu0.b32.start [1/16] %v17, 128
    %89 = vxpose.xlu0.b32.cont [2/16] 0.0, 128
    %90 = vxpose.xlu0.b32.cont [3/16] 0.0, 128
    %91 = vxpose.xlu0.b32.cont [4/16] 0.0, 128
    %92 = vxpose.xlu0.b32.cont [5/16] 0.0, 128
    %93 = vxpose.xlu0.b32.cont [6/16] 0.0, 128
    %94 = vxpose.xlu0.b32.cont [7/16] 0.0, 128
    %95 = vxpose.xlu0.b32.cont [8/16] 0.0, 128
    %96 = vxpose.xlu0.b32.cont [9/16] 0.0, 128
    %97 = vxpose.xlu0.b32.cont [10/16] 0.0, 128
    %98 = vxpose.xlu0.b32.cont [11/16] 0.0, 128
    %99 = vxpose.xlu0.b32.cont [12/16] 0.0, 128
    %100 = vxpose.xlu0.b32.cont [13/16] 0.0, 128
    %101 = vxpose.xlu0.b32.cont [14/16] 0.0, 128
    %102 = vxpose.xlu0.b32.cont [15/16] 0.0, 128
    %103 = vxpose.xlu0.b32.end [16/16] 0.0, 128
    %v104 = vpop.trf.xlu0
    %v105 = vpop.trf.xlu0
    %v106 = vpop.trf.xlu0
    %v107 = vpop.trf.xlu0
    %v108 = vpop.trf.xlu0
    %v109 = vpop.trf.xlu0
    %v110 = vpop.trf.xlu0
    %v111 = vpop.trf.xlu0
    %v112 = vpop.trf.xlu0
    %v113 = vpop.trf.xlu0
    %v114 = vpop.trf.xlu0
    %v115 = vpop.trf.xlu0
    %v116 = vpop.trf.xlu0
    %v117 = vpop.trf.xlu0
    %v118 = vpop.trf.xlu0
    %v119 = vpop.trf.xlu0
    %120 = vxpose.xlu0.b32.start [1/16] %v21, 128
    %121 = vxpose.xlu0.b32.cont [2/16] 0.0, 128
    %122 = vxpose.xlu0.b32.cont [3/16] 0.0, 128
    %123 = vxpose.xlu0.b32.cont [4/16] 0.0, 128
    %124 = vxpose.xlu0.b32.cont [5/16] 0.0, 128
    %125 = vxpose.xlu0.b32.cont [6/16] 0.0, 128
    %126 = vxpose.xlu0.b32.cont [7/16] 0.0, 128
    %127 = vxpose.xlu0.b32.cont [8/16] 0.0, 128
    %128 = vxpose.xlu0.b32.cont [9/16] 0.0, 128
    %129 = vxpose.xlu0.b32.cont [10/16] 0.0, 128
    %130 = vxpose.xlu0.b32.cont [11/16] 0.0, 128
    %131 = vxpose.xlu0.b32.cont [12/16] 0.0, 128
    %132 = vxpose.xlu0.b32.cont [13/16] 0.0, 128
    %133 = vxpose.xlu0.b32.cont [14/16] 0.0, 128
    %134 = vxpose.xlu0.b32.cont [15/16] 0.0, 128
    %135 = vxpose.xlu0.b32.end [16/16] 0.0, 128
    %v136 = vpop.trf.xlu0
    %v137 = vpop.trf.xlu0
    %v138 = vpop.trf.xlu0
    %v139 = vpop.trf.xlu0
    %v140 = vpop.trf.xlu0
    %v141 = vpop.trf.xlu0
    %v142 = vpop.trf.xlu0
    %v143 = vpop.trf.xlu0
    %v144 = vpop.trf.xlu0
    %v145 = vpop.trf.xlu0
    %v146 = vpop.trf.xlu0
    %v147 = vpop.trf.xlu0
    %v148 = vpop.trf.xlu0
    %v149 = vpop.trf.xlu0
    %v150 = vpop.trf.xlu0
    %v151 = vpop.trf.xlu0
    %vm152 = vcmask 31744
    %v154 = vsel %vm152, %v40, 0
    %v157 = vsel %vm152, %v41, 0
    %v160 = vsel %vm152, %v42, 0
    %v163 = vsel %vm152, %v43, 0
    %v166 = vsel %vm152, %v44, 0
    %v169 = vsel %vm152, %v45, 0
    %v172 = vsel %vm152, %v46, 0
    %v175 = vsel %vm152, %v47, 0
    %v178 = vsel %vm152, %v48, 0
    %v181 = vsel %vm152, %v49, 0
    %v184 = vsel %vm152, %v50, 0
    %v187 = vsel %vm152, %v51, 0
    %v190 = vsel %vm152, %v52, 0
    %v193 = vsel %vm152, %v53, 0
    %v196 = vsel %vm152, %v54, 0
    %v199 = vsel %vm152, %v55, 0
    %v202 = vsel %vm152, %v72, 0
    %v205 = vsel %vm152, %v73, 0
    %v208 = vsel %vm152, %v74, 0
    %v211 = vsel %vm152, %v75, 0
    %v214 = vsel %vm152, %v76, 0
    %v217 = vsel %vm152, %v77, 0
    %v220 = vsel %vm152, %v78, 0
    %v223 = vsel %vm152, %v79, 0
    %v226 = vsel %vm152, %v80, 0
    %v229 = vsel %vm152, %v81, 0
    %v232 = vsel %vm152, %v82, 0
    %v235 = vsel %vm152, %v83, 0
    %v238 = vsel %vm152, %v84, 0
    %v241 = vsel %vm152, %v85, 0
    %v244 = vsel %vm152, %v86, 0
    %v247 = vsel %vm152, %v87, 0
    %v250 = vsel %vm152, %v104, 0
    %v253 = vsel %vm152, %v105, 0
    %v256 = vsel %vm152, %v106, 0
    %v259 = vsel %vm152, %v107, 0
    %v262 = vsel %vm152, %v108, 0
    %v265 = vsel %vm152, %v109, 0
    %v268 = vsel %vm152, %v110, 0
    %v271 = vsel %vm152, %v111, 0
    %v274 = vsel %vm152, %v112, 0
    %v277 = vsel %vm152, %v113, 0
    %v280 = vsel %vm152, %v114, 0
    %v283 = vsel %vm152, %v115, 0
    %v286 = vsel %vm152, %v116, 0
    %v289 = vsel %vm152, %v117, 0
    %v292 = vsel %vm152, %v118, 0
    %v295 = vsel %vm152, %v119, 0
    %v298 = vsel %vm152, %v136, 0
    %v301 = vsel %vm152, %v137, 0
    %v304 = vsel %vm152, %v138, 0
    %v307 = vsel %vm152, %v139, 0
    %v310 = vsel %vm152, %v140, 0
    %v313 = vsel %vm152, %v141, 0
    %v316 = vsel %vm152, %v142, 0
    %v319 = vsel %vm152, %v143, 0
    %v322 = vsel %vm152, %v144, 0
    %v325 = vsel %vm152, %v145, 0
    %v328 = vsel %vm152, %v146, 0
    %v331 = vsel %vm152, %v147, 0
    %v334 = vsel %vm152, %v148, 0
    %v337 = vsel %vm152, %v149, 0
    %v340 = vsel %vm152, %v150, 0
    %v343 = vsel %vm152, %v151, 0
    %v346 = vsel %vm152, %v15, 0
    %348 = vmatprep.subr.mxu0 0.0
    %349 = vmatpush1.xpose.msra.mxu0 0.0
    %350 = vmatprep.subr.mxu0 0.0
    %351 = vmatpush1.xpose.msra.mxu0 0.0
    %352 = vmatprep.subr.mxu0 0.0
    %353 = vmatpush1.xpose.msra.mxu0 0.0
    %354 = vmatprep.subr.mxu0 0.0
    %355 = vmatpush1.xpose.msra.mxu0 0.0
    %356 = vmatprep.subr.mxu0 0.0
    %357 = vmatpush1.xpose.msra.mxu0 0.0
    %358 = vmatprep.subr.mxu0 0.0
    %359 = vmatpush1.xpose.msra.mxu0 0.0
    %360 = vmatprep.subr.mxu0 0.0
    %361 = vmatpush1.xpose.msra.mxu0 0.0
    %362 = vmatprep.subr.mxu0 0.0
    %363 = vmatpush1.xpose.msra.mxu0 0.0
    %364 = vmatprep.subr.mxu0 0.0
    %365 = vmatpush1.xpose.msra.mxu0 0.0
    %366 = vmatprep.subr.mxu0 0.0
    %367 = vmatpush1.xpose.msra.mxu0 0.0
    %368 = vmatprep.subr.mxu0 0.0
    %369 = vmatpush1.xpose.msra.mxu0 0.0
    %370 = vmatprep.subr.mxu0 0.0
    %371 = vmatpush1.xpose.msra.mxu0 0.0
    %372 = vmatprep.subr.mxu0 0.0
    %373 = vmatpush1.xpose.msra.mxu0 0.0
    %374 = vmatprep.subr.mxu0 0.0
    %375 = vmatpush1.xpose.msra.mxu0 0.0
    %376 = vmatprep.subr.mxu0 0.0
    %377 = vmatpush1.xpose.msra.mxu0 0.0
    %378 = vmatprep.subr.mxu0 0.0
    %379 = vmatpush1.xpose.msra.mxu0 %v346
    %380 = vmatprep.subr.mxu0 0.0
    %381 = vmatpush2.xpose.msra.mxu0 0.0
    %382 = vmatprep.subr.mxu0 0.0
    %383 = vmatpush2.xpose.msra.mxu0 0.0
    %384 = vmatprep.subr.mxu0 0.0
    %385 = vmatpush2.xpose.msra.mxu0 0.0
    %386 = vmatprep.subr.mxu0 0.0
    %387 = vmatpush2.xpose.msra.mxu0 0.0
    %388 = vmatprep.subr.mxu0 0.0
    %389 = vmatpush2.xpose.msra.mxu0 0.0
    %390 = vmatprep.subr.mxu0 0.0
    %391 = vmatpush2.xpose.msra.mxu0 0.0
    %392 = vmatprep.subr.mxu0 0.0
    %393 = vmatpush2.xpose.msra.mxu0 0.0
    %394 = vmatprep.subr.mxu0 0.0
    %395 = vmatpush2.xpose.msra.mxu0 0.0
    %396 = vmatprep.subr.mxu0 0.0
    %397 = vmatpush2.xpose.msra.mxu0 0.0
    %398 = vmatprep.subr.mxu0 0.0
    %399 = vmatpush2.xpose.msra.mxu0 0.0
    %400 = vmatprep.subr.mxu0 0.0
    %401 = vmatpush2.xpose.msra.mxu0 0.0
    %402 = vmatprep.subr.mxu0 0.0
    %403 = vmatpush2.xpose.msra.mxu0 0.0
    %404 = vmatprep.subr.mxu0 0.0
    %405 = vmatpush2.xpose.msra.mxu0 0.0
    %406 = vmatprep.subr.mxu0 0.0
    %407 = vmatpush2.xpose.msra.mxu0 0.0
    %408 = vmatprep.subr.mxu0 0.0
    %409 = vmatpush2.xpose.msra.mxu0 0.0
    %410 = vmatprep.subr.mxu0 0.0
    %411 = vmatpush2.xpose.msra.mxu0 0.0
    %412 = vmatprep.mubr.f32.mxu0 0.0
    %413 = vmatmul.mubr.f32.gmra.mxu0 %v154
    %v414 = vpop.f32.mrf.mxu0
    %v415 = vadd.f32 0.0, %v414
    %v416 = vpop.f32.mrf.mxu0
    %417 = vmatprep.mubr.f32.mxu0 0.0
    %418 = vmatmul.mubr.f32.gmra.mxu0 %v157
    %v419 = vpop.f32.mrf.mxu0
    %v420 = vadd.f32 0.0, %v419
    %v421 = vpop.f32.mrf.mxu0
    %422 = vmatprep.mubr.f32.mxu0 0.0
    %423 = vmatmul.mubr.f32.gmra.mxu0 %v160
    %v424 = vpop.f32.mrf.mxu0
    %v425 = vadd.f32 0.0, %v424
    %v426 = vpop.f32.mrf.mxu0
    %427 = vmatprep.mubr.f32.mxu0 0.0
    %428 = vmatmul.mubr.f32.gmra.mxu0 %v163
    %v429 = vpop.f32.mrf.mxu0
    %v430 = vadd.f32 0.0, %v429
    %v431 = vpop.f32.mrf.mxu0
    %432 = vmatprep.mubr.f32.mxu0 0.0
    %433 = vmatmul.mubr.f32.gmra.mxu0 %v166
    %v434 = vpop.f32.mrf.mxu0
    %v435 = vadd.f32 0.0, %v434
    %v436 = vpop.f32.mrf.mxu0
    %437 = vmatprep.mubr.f32.mxu0 0.0
    %438 = vmatmul.mubr.f32.gmra.mxu0 %v169
    %v439 = vpop.f32.mrf.mxu0
    %v440 = vadd.f32 0.0, %v439
    %v441 = vpop.f32.mrf.mxu0
    %442 = vmatprep.mubr.f32.mxu0 0.0
    %443 = vmatmul.mubr.f32.gmra.mxu0 %v172
    %v444 = vpop.f32.mrf.mxu0
    %v445 = vadd.f32 0.0, %v444
    %v446 = vpop.f32.mrf.mxu0
    %447 = vmatprep.mubr.f32.mxu0 0.0
    %448 = vmatmul.mubr.f32.gmra.mxu0 %v175
    %v449 = vpop.f32.mrf.mxu0
    %v450 = vadd.f32 0.0, %v449
    %v451 = vpop.f32.mrf.mxu0
    %452 = vmatprep.mubr.f32.mxu0 0.0
    %453 = vmatmul.mubr.f32.gmra.mxu0 %v178
    %v454 = vpop.f32.mrf.mxu0
    %v455 = vadd.f32 0.0, %v454
    %v456 = vpop.f32.mrf.mxu0
    %457 = vmatprep.mubr.f32.mxu0 0.0
    %458 = vmatmul.mubr.f32.gmra.mxu0 %v181
    %v459 = vpop.f32.mrf.mxu0
    %v460 = vadd.f32 0.0, %v459
    %v461 = vpop.f32.mrf.mxu0
    %462 = vmatprep.mubr.f32.mxu0 0.0
    %463 = vmatmul.mubr.f32.gmra.mxu0 %v184
    %v464 = vpop.f32.mrf.mxu0
    %v465 = vadd.f32 0.0, %v464
    %v466 = vpop.f32.mrf.mxu0
    %467 = vmatprep.mubr.f32.mxu0 0.0
    %468 = vmatmul.mubr.f32.gmra.mxu0 %v187
    %v469 = vpop.f32.mrf.mxu0
    %v470 = vadd.f32 0.0, %v469
    %v471 = vpop.f32.mrf.mxu0
    %472 = vmatprep.mubr.f32.mxu0 0.0
    %473 = vmatmul.mubr.f32.gmra.mxu0 %v190
    %v474 = vpop.f32.mrf.mxu0
    %v475 = vadd.f32 0.0, %v474
    %v476 = vpop.f32.mrf.mxu0
    %477 = vmatprep.mubr.f32.mxu0 0.0
    %478 = vmatmul.mubr.f32.gmra.mxu0 %v193
    %v479 = vpop.f32.mrf.mxu0
    %v480 = vadd.f32 0.0, %v479
    %v481 = vpop.f32.mrf.mxu0
    %482 = vmatprep.mubr.f32.mxu0 0.0
    %483 = vmatmul.mubr.f32.gmra.mxu0 %v196
    %v484 = vpop.f32.mrf.mxu0
    %v485 = vadd.f32 0.0, %v484
    %v486 = vpop.f32.mrf.mxu0
    %487 = vmatprep.mubr.f32.mxu0 0.0
    %488 = vmatmul.mubr.f32.gmra.mxu0 %v199
    %v489 = vpop.f32.mrf.mxu0
    %v490 = vadd.f32 0.0, %v489
    %v491 = vpop.f32.mrf.mxu0
    %492 = vmatprep.mubr.f32.mxu0 0.0
    %493 = vmatmul.mubr.f32.gmra.mxu0 %v202
    %v494 = vpop.f32.mrf.mxu0
    %v495 = vadd.f32 0.0, %v494
    %v496 = vpop.f32.mrf.mxu0
    %497 = vmatprep.mubr.f32.mxu0 0.0
    %498 = vmatmul.mubr.f32.gmra.mxu0 %v205
    %v499 = vpop.f32.mrf.mxu0
    %v500 = vadd.f32 0.0, %v499
    %v501 = vpop.f32.mrf.mxu0
    %502 = vmatprep.mubr.f32.mxu0 0.0
    %503 = vmatmul.mubr.f32.gmra.mxu0 %v208
    %v504 = vpop.f32.mrf.mxu0
    %v505 = vadd.f32 0.0, %v504
    %v506 = vpop.f32.mrf.mxu0
    %507 = vmatprep.mubr.f32.mxu0 0.0
    %508 = vmatmul.mubr.f32.gmra.mxu0 %v211
    %v509 = vpop.f32.mrf.mxu0
    %v510 = vadd.f32 0.0, %v509
    %v511 = vpop.f32.mrf.mxu0
    %512 = vmatprep.mubr.f32.mxu0 0.0
    %513 = vmatmul.mubr.f32.gmra.mxu0 %v214
    %v514 = vpop.f32.mrf.mxu0
    %v515 = vadd.f32 0.0, %v514
    %v516 = vpop.f32.mrf.mxu0
    %517 = vmatprep.mubr.f32.mxu0 0.0
    %518 = vmatmul.mubr.f32.gmra.mxu0 %v217
    %v519 = vpop.f32.mrf.mxu0
    %v520 = vadd.f32 0.0, %v519
    %v521 = vpop.f32.mrf.mxu0
    %522 = vmatprep.mubr.f32.mxu0 0.0
    %523 = vmatmul.mubr.f32.gmra.mxu0 %v220
    %v524 = vpop.f32.mrf.mxu0
    %v525 = vadd.f32 0.0, %v524
    %v526 = vpop.f32.mrf.mxu0
    %527 = vmatprep.mubr.f32.mxu0 0.0
    %528 = vmatmul.mubr.f32.gmra.mxu0 %v223
    %v529 = vpop.f32.mrf.mxu0
    %v530 = vadd.f32 0.0, %v529
    %v531 = vpop.f32.mrf.mxu0
    %532 = vmatprep.mubr.f32.mxu0 0.0
    %533 = vmatmul.mubr.f32.gmra.mxu0 %v226
    %v534 = vpop.f32.mrf.mxu0
    %v535 = vadd.f32 0.0, %v534
    %v536 = vpop.f32.mrf.mxu0
    %537 = vmatprep.mubr.f32.mxu0 0.0
    %538 = vmatmul.mubr.f32.gmra.mxu0 %v229
    %v539 = vpop.f32.mrf.mxu0
    %v540 = vadd.f32 0.0, %v539
    %v541 = vpop.f32.mrf.mxu0
    %542 = vmatprep.mubr.f32.mxu0 0.0
    %543 = vmatmul.mubr.f32.gmra.mxu0 %v232
    %v544 = vpop.f32.mrf.mxu0
    %v545 = vadd.f32 0.0, %v544
    %v546 = vpop.f32.mrf.mxu0
    %547 = vmatprep.mubr.f32.mxu0 0.0
    %548 = vmatmul.mubr.f32.gmra.mxu0 %v235
    %v549 = vpop.f32.mrf.mxu0
    %v550 = vadd.f32 0.0, %v549
    %v551 = vpop.f32.mrf.mxu0
    %552 = vmatprep.mubr.f32.mxu0 0.0
    %553 = vmatmul.mubr.f32.gmra.mxu0 %v238
    %v554 = vpop.f32.mrf.mxu0
    %v555 = vadd.f32 0.0, %v554
    %v556 = vpop.f32.mrf.mxu0
    %557 = vmatprep.mubr.f32.mxu0 0.0
    %558 = vmatmul.mubr.f32.gmra.mxu0 %v241
    %v559 = vpop.f32.mrf.mxu0
    %v560 = vadd.f32 0.0, %v559
    %v561 = vpop.f32.mrf.mxu0
    %562 = vmatprep.mubr.f32.mxu0 0.0
    %563 = vmatmul.mubr.f32.gmra.mxu0 %v244
    %v564 = vpop.f32.mrf.mxu0
    %v565 = vadd.f32 0.0, %v564
    %v566 = vpop.f32.mrf.mxu0
    %567 = vmatprep.mubr.f32.mxu0 0.0
    %568 = vmatmul.mubr.f32.gmra.mxu0 %v247
    %v569 = vpop.f32.mrf.mxu0
    %v570 = vadd.f32 0.0, %v569
    %v571 = vpop.f32.mrf.mxu0
    %572 = vmatprep.mubr.f32.mxu0 0.0
    %573 = vmatmul.mubr.f32.gmra.mxu0 %v250
    %v574 = vpop.f32.mrf.mxu0
    %v575 = vadd.f32 0.0, %v574
    %v576 = vpop.f32.mrf.mxu0
    %577 = vmatprep.mubr.f32.mxu0 0.0
    %578 = vmatmul.mubr.f32.gmra.mxu0 %v253
    %v579 = vpop.f32.mrf.mxu0
    %v580 = vadd.f32 0.0, %v579
    %v581 = vpop.f32.mrf.mxu0
    %582 = vmatprep.mubr.f32.mxu0 0.0
    %583 = vmatmul.mubr.f32.gmra.mxu0 %v256
    %v584 = vpop.f32.mrf.mxu0
    %v585 = vadd.f32 0.0, %v584
    %v586 = vpop.f32.mrf.mxu0
    %587 = vmatprep.mubr.f32.mxu0 0.0
    %588 = vmatmul.mubr.f32.gmra.mxu0 %v259
    %v589 = vpop.f32.mrf.mxu0
    %v590 = vadd.f32 0.0, %v589
    %v591 = vpop.f32.mrf.mxu0
    %592 = vmatprep.mubr.f32.mxu0 0.0
    %593 = vmatmul.mubr.f32.gmra.mxu0 %v262
    %v594 = vpop.f32.mrf.mxu0
    %v595 = vadd.f32 0.0, %v594
    %v596 = vpop.f32.mrf.mxu0
    %597 = vmatprep.mubr.f32.mxu0 0.0
    %598 = vmatmul.mubr.f32.gmra.mxu0 %v265
    %v599 = vpop.f32.mrf.mxu0
    %v600 = vadd.f32 0.0, %v599
    %v601 = vpop.f32.mrf.mxu0
    %602 = vmatprep.mubr.f32.mxu0 0.0
    %603 = vmatmul.mubr.f32.gmra.mxu0 %v268
    %v604 = vpop.f32.mrf.mxu0
    %v605 = vadd.f32 0.0, %v604
    %v606 = vpop.f32.mrf.mxu0
    %607 = vmatprep.mubr.f32.mxu0 0.0
    %608 = vmatmul.mubr.f32.gmra.mxu0 %v271
    %v609 = vpop.f32.mrf.mxu0
    %v610 = vadd.f32 0.0, %v609
    %v611 = vpop.f32.mrf.mxu0
    %612 = vmatprep.mubr.f32.mxu0 0.0
    %613 = vmatmul.mubr.f32.gmra.mxu0 %v274
    %v614 = vpop.f32.mrf.mxu0
    %v615 = vadd.f32 0.0, %v614
    %v616 = vpop.f32.mrf.mxu0
    %617 = vmatprep.mubr.f32.mxu0 0.0
    %618 = vmatmul.mubr.f32.gmra.mxu0 %v277
    %v619 = vpop.f32.mrf.mxu0
    %v620 = vadd.f32 0.0, %v619
    %v621 = vpop.f32.mrf.mxu0
    %622 = vmatprep.mubr.f32.mxu0 0.0
    %623 = vmatmul.mubr.f32.gmra.mxu0 %v280
    %v624 = vpop.f32.mrf.mxu0
    %v625 = vadd.f32 0.0, %v624
    %v626 = vpop.f32.mrf.mxu0
    %627 = vmatprep.mubr.f32.mxu0 0.0
    %628 = vmatmul.mubr.f32.gmra.mxu0 %v283
    %v629 = vpop.f32.mrf.mxu0
    %v630 = vadd.f32 0.0, %v629
    %v631 = vpop.f32.mrf.mxu0
    %632 = vmatprep.mubr.f32.mxu0 0.0
    %633 = vmatmul.mubr.f32.gmra.mxu0 %v286
    %v634 = vpop.f32.mrf.mxu0
    %v635 = vadd.f32 0.0, %v634
    %v636 = vpop.f32.mrf.mxu0
    %637 = vmatprep.mubr.f32.mxu0 0.0
    %638 = vmatmul.mubr.f32.gmra.mxu0 %v289
    %v639 = vpop.f32.mrf.mxu0
    %v640 = vadd.f32 0.0, %v639
    %v641 = vpop.f32.mrf.mxu0
    %642 = vmatprep.mubr.f32.mxu0 0.0
    %643 = vmatmul.mubr.f32.gmra.mxu0 %v292
    %v644 = vpop.f32.mrf.mxu0
    %v645 = vadd.f32 0.0, %v644
    %v646 = vpop.f32.mrf.mxu0
    %647 = vmatprep.mubr.f32.mxu0 0.0
    %648 = vmatmul.mubr.f32.gmra.mxu0 %v295
    %v649 = vpop.f32.mrf.mxu0
    %v650 = vadd.f32 0.0, %v649
    %v651 = vpop.f32.mrf.mxu0
    %652 = vmatprep.mubr.f32.mxu0 0.0
    %653 = vmatmul.mubr.f32.gmra.mxu0 %v298
    %v654 = vpop.f32.mrf.mxu0
    %v655 = vadd.f32 0.0, %v654
    %v656 = vpop.f32.mrf.mxu0
    %657 = vmatprep.mubr.f32.mxu0 0.0
    %658 = vmatmul.mubr.f32.gmra.mxu0 %v301
    %v659 = vpop.f32.mrf.mxu0
    %v660 = vadd.f32 0.0, %v659
    %v661 = vpop.f32.mrf.mxu0
    %662 = vmatprep.mubr.f32.mxu0 0.0
    %663 = vmatmul.mubr.f32.gmra.mxu0 %v304
    %v664 = vpop.f32.mrf.mxu0
    %v665 = vadd.f32 0.0, %v664
    %v666 = vpop.f32.mrf.mxu0
    %667 = vmatprep.mubr.f32.mxu0 0.0
    %668 = vmatmul.mubr.f32.gmra.mxu0 %v307
    %v669 = vpop.f32.mrf.mxu0
    %v670 = vadd.f32 0.0, %v669
    %v671 = vpop.f32.mrf.mxu0
    %672 = vmatprep.mubr.f32.mxu0 0.0
    %673 = vmatmul.mubr.f32.gmra.mxu0 %v310
    %v674 = vpop.f32.mrf.mxu0
    %v675 = vadd.f32 0.0, %v674
    %v676 = vpop.f32.mrf.mxu0
    %677 = vmatprep.mubr.f32.mxu0 0.0
    %678 = vmatmul.mubr.f32.gmra.mxu0 %v313
    %v679 = vpop.f32.mrf.mxu0
    %v680 = vadd.f32 0.0, %v679
    %v681 = vpop.f32.mrf.mxu0
    %682 = vmatprep.mubr.f32.mxu0 0.0
    %683 = vmatmul.mubr.f32.gmra.mxu0 %v316
    %v684 = vpop.f32.mrf.mxu0
    %v685 = vadd.f32 0.0, %v684
    %v686 = vpop.f32.mrf.mxu0
    %687 = vmatprep.mubr.f32.mxu0 0.0
    %688 = vmatmul.mubr.f32.gmra.mxu0 %v319
    %v689 = vpop.f32.mrf.mxu0
    %v690 = vadd.f32 0.0, %v689
    %v691 = vpop.f32.mrf.mxu0
    %692 = vmatprep.mubr.f32.mxu0 0.0
    %693 = vmatmul.mubr.f32.gmra.mxu0 %v322
    %v694 = vpop.f32.mrf.mxu0
    %v695 = vadd.f32 0.0, %v694
    %v696 = vpop.f32.mrf.mxu0
    %697 = vmatprep.mubr.f32.mxu0 0.0
    %698 = vmatmul.mubr.f32.gmra.mxu0 %v325
    %v699 = vpop.f32.mrf.mxu0
    %v700 = vadd.f32 0.0, %v699
    %v701 = vpop.f32.mrf.mxu0
    %702 = vmatprep.mubr.f32.mxu0 0.0
    %703 = vmatmul.mubr.f32.gmra.mxu0 %v328
    %v704 = vpop.f32.mrf.mxu0
    %v705 = vadd.f32 0.0, %v704
    %v706 = vpop.f32.mrf.mxu0
    %707 = vmatprep.mubr.f32.mxu0 0.0
    %708 = vmatmul.mubr.f32.gmra.mxu0 %v331
    %v709 = vpop.f32.mrf.mxu0
    %v710 = vadd.f32 0.0, %v709
    %v711 = vpop.f32.mrf.mxu0
    %712 = vmatprep.mubr.f32.mxu0 0.0
    %713 = vmatmul.mubr.f32.gmra.mxu0 %v334
    %v714 = vpop.f32.mrf.mxu0
    %v715 = vadd.f32 0.0, %v714
    %v716 = vpop.f32.mrf.mxu0
    %717 = vmatprep.mubr.f32.mxu0 0.0
    %718 = vmatmul.mubr.f32.gmra.mxu0 %v337
    %v719 = vpop.f32.mrf.mxu0
    %v720 = vadd.f32 0.0, %v719
    %v721 = vpop.f32.mrf.mxu0
    %722 = vmatprep.mubr.f32.mxu0 0.0
    %723 = vmatmul.mubr.f32.gmra.mxu0 %v340
    %v724 = vpop.f32.mrf.mxu0
    %v725 = vadd.f32 0.0, %v724
    %v726 = vpop.f32.mrf.mxu0
    %727 = vmatprep.mubr.f32.mxu0 0.0
    %728 = vmatmul.mubr.f32.gmra.mxu0 %v343
    %v729 = vpop.f32.mrf.mxu0
    %v730 = vadd.f32 0.0, %v729
    %v731 = vpop.f32.mrf.mxu0
    %732 = vdwg.mxu0
    %733 = vxpose.xlu0.b32.start [1/16] %v415, 128
    %734 = vxpose.xlu0.b32.cont [2/16] %v420, 128
    %735 = vxpose.xlu0.b32.cont [3/16] %v425, 128
    %736 = vxpose.xlu0.b32.cont [4/16] %v430, 128
    %737 = vxpose.xlu0.b32.cont [5/16] %v435, 128
    %738 = vxpose.xlu0.b32.cont [6/16] %v440, 128
    %739 = vxpose.xlu0.b32.cont [7/16] %v445, 128
    %740 = vxpose.xlu0.b32.cont [8/16] %v450, 128
    %741 = vxpose.xlu0.b32.cont [9/16] %v455, 128
    %742 = vxpose.xlu0.b32.cont [10/16] %v460, 128
    %743 = vxpose.xlu0.b32.cont [11/16] %v465, 128
    %744 = vxpose.xlu0.b32.cont [12/16] %v470, 128
    %745 = vxpose.xlu0.b32.cont [13/16] %v475, 128
    %746 = vxpose.xlu0.b32.cont [14/16] %v480, 128
    %747 = vxpose.xlu0.b32.cont [15/16] %v485, 128
    %748 = vxpose.xlu0.b32.end [16/16] %v490, 128
    %v749 = vpop.trf.xlu0
    %v750 = vpop.trf.xlu0
    %v751 = vpop.trf.xlu0
    %v752 = vpop.trf.xlu0
    %v753 = vpop.trf.xlu0
    %v754 = vpop.trf.xlu0
    %v755 = vpop.trf.xlu0
    %v756 = vpop.trf.xlu0
    %v757 = vpop.trf.xlu0
    %v758 = vpop.trf.xlu0
    %v759 = vpop.trf.xlu0
    %v760 = vpop.trf.xlu0
    %v761 = vpop.trf.xlu0
    %v762 = vpop.trf.xlu0
    %v763 = vpop.trf.xlu0
    %v764 = vpop.trf.xlu0
    %765 = vxpose.xlu0.b32.start [1/16] %v495, 128
    %766 = vxpose.xlu0.b32.cont [2/16] %v500, 128
    %767 = vxpose.xlu0.b32.cont [3/16] %v505, 128
    %768 = vxpose.xlu0.b32.cont [4/16] %v510, 128
    %769 = vxpose.xlu0.b32.cont [5/16] %v515, 128
    %770 = vxpose.xlu0.b32.cont [6/16] %v520, 128
    %771 = vxpose.xlu0.b32.cont [7/16] %v525, 128
    %772 = vxpose.xlu0.b32.cont [8/16] %v530, 128
    %773 = vxpose.xlu0.b32.cont [9/16] %v535, 128
    %774 = vxpose.xlu0.b32.cont [10/16] %v540, 128
    %775 = vxpose.xlu0.b32.cont [11/16] %v545, 128
    %776 = vxpose.xlu0.b32.cont [12/16] %v550, 128
    %777 = vxpose.xlu0.b32.cont [13/16] %v555, 128
    %778 = vxpose.xlu0.b32.cont [14/16] %v560, 128
    %779 = vxpose.xlu0.b32.cont [15/16] %v565, 128
    %780 = vxpose.xlu0.b32.end [16/16] %v570, 128
    %v781 = vpop.trf.xlu0
    %v782 = vpop.trf.xlu0
    %v783 = vpop.trf.xlu0
    %v784 = vpop.trf.xlu0
    %v785 = vpop.trf.xlu0
    %v786 = vpop.trf.xlu0
    %v787 = vpop.trf.xlu0
    %v788 = vpop.trf.xlu0
    %v789 = vpop.trf.xlu0
    %v790 = vpop.trf.xlu0
    %v791 = vpop.trf.xlu0
    %v792 = vpop.trf.xlu0
    %v793 = vpop.trf.xlu0
    %v794 = vpop.trf.xlu0
    %v795 = vpop.trf.xlu0
    %v796 = vpop.trf.xlu0
    %797 = vxpose.xlu0.b32.start [1/16] %v575, 128
    %798 = vxpose.xlu0.b32.cont [2/16] %v580, 128
    %799 = vxpose.xlu0.b32.cont [3/16] %v585, 128
    %800 = vxpose.xlu0.b32.cont [4/16] %v590, 128
    %801 = vxpose.xlu0.b32.cont [5/16] %v595, 128
    %802 = vxpose.xlu0.b32.cont [6/16] %v600, 128
    %803 = vxpose.xlu0.b32.cont [7/16] %v605, 128
    %804 = vxpose.xlu0.b32.cont [8/16] %v610, 128
    %805 = vxpose.xlu0.b32.cont [9/16] %v615, 128
    %806 = vxpose.xlu0.b32.cont [10/16] %v620, 128
    %807 = vxpose.xlu0.b32.cont [11/16] %v625, 128
    %808 = vxpose.xlu0.b32.cont [12/16] %v630, 128
    %809 = vxpose.xlu0.b32.cont [13/16] %v635, 128
    %810 = vxpose.xlu0.b32.cont [14/16] %v640, 128
    %811 = vxpose.xlu0.b32.cont [15/16] %v645, 128
    %812 = vxpose.xlu0.b32.end [16/16] %v650, 128
    %v813 = vpop.trf.xlu0
    %v814 = vpop.trf.xlu0
    %v815 = vpop.trf.xlu0
    %v816 = vpop.trf.xlu0
    %v817 = vpop.trf.xlu0
    %v818 = vpop.trf.xlu0
    %v819 = vpop.trf.xlu0
    %v820 = vpop.trf.xlu0
    %v821 = vpop.trf.xlu0
    %v822 = vpop.trf.xlu0
    %v823 = vpop.trf.xlu0
    %v824 = vpop.trf.xlu0
    %v825 = vpop.trf.xlu0
    %v826 = vpop.trf.xlu0
    %v827 = vpop.trf.xlu0
    %v828 = vpop.trf.xlu0
    %829 = vxpose.xlu0.b32.start [1/16] %v655, 128
    %830 = vxpose.xlu0.b32.cont [2/16] %v660, 128
    %831 = vxpose.xlu0.b32.cont [3/16] %v665, 128
    %832 = vxpose.xlu0.b32.cont [4/16] %v670, 128
    %833 = vxpose.xlu0.b32.cont [5/16] %v675, 128
    %834 = vxpose.xlu0.b32.cont [6/16] %v680, 128
    %835 = vxpose.xlu0.b32.cont [7/16] %v685, 128
    %836 = vxpose.xlu0.b32.cont [8/16] %v690, 128
    %837 = vxpose.xlu0.b32.cont [9/16] %v695, 128
    %838 = vxpose.xlu0.b32.cont [10/16] %v700, 128
    %839 = vxpose.xlu0.b32.cont [11/16] %v705, 128
    %840 = vxpose.xlu0.b32.cont [12/16] %v710, 128
    %841 = vxpose.xlu0.b32.cont [13/16] %v715, 128
    %842 = vxpose.xlu0.b32.cont [14/16] %v720, 128
    %843 = vxpose.xlu0.b32.cont [15/16] %v725, 128
    %844 = vxpose.xlu0.b32.end [16/16] %v730, 128
    %v845 = vpop.trf.xlu0
    %v846 = vpop.trf.xlu0
    %v847 = vpop.trf.xlu0
    %v848 = vpop.trf.xlu0
    %v849 = vpop.trf.xlu0
    %v850 = vpop.trf.xlu0
    %v851 = vpop.trf.xlu0
    %v852 = vpop.trf.xlu0
    %v853 = vpop.trf.xlu0
    %v854 = vpop.trf.xlu0
    %v855 = vpop.trf.xlu0
    %v856 = vpop.trf.xlu0
    %v857 = vpop.trf.xlu0
    %v858 = vpop.trf.xlu0
    %v859 = vpop.trf.xlu0
    %v860 = vpop.trf.xlu0
    %v861 = vld [vmem:[%s1] sm:$0xff]
    %863 = vset.pattern.permute.xlu0 0
    %864 = vperm.xlu0 %863, %v861
    %v865 = vpop.permute.xlu0 %864
    %v867 = vadd.f32 %v749, %v865
    %v868 = vadd.f32 %v781, %v865
    %v869 = vadd.f32 %v813, %v865
    %v870 = vadd.f32 %v845, %v865
    %871 = vst [vmem:[#allocation2] sm:$0xff] %v867
    %872 = vst [vmem:[#allocation2 + $0x8] sm:$0xff] %v868
    %873 = vst [vmem:[#allocation2 + $0x10] sm:$0xff] %v869
    %874 = vst [vmem:[#allocation2 + $0x18] sm:$0xff] %v870
    // Predicated region
    $region14: #{tpu_custom_call.1} parent=1 // pred_check
      _
    $region15: #{tpu_custom_call.1} parent=1 // pred_check_branch
      %876 = sbr.rel (0) target = $region17
    $region16: #{tpu_custom_call.1} parent=1 // pred_region
      %s878 = ssub.s32 512, 512
      %879 = vsyncadd [#allocation3], %s878
      %s880 = sshll.u32 [#allocation2], 4
      %s881 = int_to_ptr.vmem [resolvable:$true] %s880
      %886 = dma.vmem_to_hbm [thread:$0]  %s881, 512, %s3, [#allocation3], 256, 256, 16
    $region17: #{tpu_custom_call.1} parent=1 // pred_fallthru
      _
    // Predicated region
    $region18: #{tpu_custom_call.1} parent=1 // pred_check
      _
    $region19: #{tpu_custom_call.1} parent=1 // pred_check_branch
      %888 = sbr.rel (0) target = $region21
    $region20: #{tpu_custom_call.1} parent=1 // pred_region
      %889 = dma.done [#allocation3], 512
    $region21: #{tpu_custom_call.1} parent=1 // pred_fallthru
      _
    %890 = vsyncpa [#allocation3], 1

</llo_original>
